<compile_context>
chip_gen: v6e
topology: v6e:2x2x1
jax: 0.10.0
libtpu: 0.0.40
codegen_flags: <defaults>
</compile_context>

<pallas_src>
import jax
import jax.numpy as jnp
from jax.experimental import pallas as pl
from jax.experimental.pallas import tpu as pltpu


def _linear_seq_att_kernel(x_ref, mask_ref, w_ref, out_ref, acc_ref):
    # x_ref:    (TB, S, TD) caller dtype  VMEM
    # mask_ref: (TB, S)     int32         VMEM   (nonzero => masked)
    # w_ref:    (1, 1, TD)  float32       VMEM
    # out_ref:  (TB, S)     float32       VMEM
    # acc_ref:  (TB, S)     float32       VMEM scratch (partial scores)
    k = pl.program_id(1)

    @pl.when(k == 0)
    def _():
        acc_ref[...] = jnp.zeros_like(acc_ref)

    # Partial mat-vec over this D chunk: VPU broadcast multiply + XLU lane
    # reduce (no lane-sparse N=1 MXU matmul). Upcast to f32 in-kernel only.
    x = x_ref[...].astype(jnp.float32)           # (TB, S, TD)
    w = w_ref[...]                               # (1, 1, TD) broadcasts
    acc_ref[...] += jnp.sum(x * w, axis=-1)      # (TB, S)

    @pl.when(k == pl.num_programs(1) - 1)
    def _():
        # masked_fill_(mask, -inf); fully-masked rows -> NaN (matches PyTorch).
        scores = jnp.where(mask_ref[...] != 0, -jnp.inf, acc_ref[...])
        m = jnp.max(scores, axis=-1, keepdims=True)
        e = jnp.exp(scores - m)
        s = jnp.sum(e, axis=-1, keepdims=True)
        out_ref[...] = e / s                      # exact divide: rows sum to 1


def _choose_blocks(B, S, D, x_itemsize, x_budget_bytes=12 << 20):
    """Pick (tb, td): batch block and D (reduction) block sizes.

    The 12 MiB double-buffered x budget keeps the full working set within
    v5e's scoped VMEM (limit is also raised explicitly below) and leaves
    ample headroom on v6e (128 MiB) and v7x (64 MiB).
    """
    row_bytes = 2 * S * D * x_itemsize           # double-buffered x bytes / batch row
    tb_min = B if B < 8 else 8                   # smallest legal batch block

    if tb_min * row_bytes > x_budget_bytes:
        # Even the smallest batch block blows the budget with full D:
        # tile the D reduction axis (accumulated in f32 scratch).
        tb = tb_min
        per_col = 2 * tb * S * x_itemsize
        td = max(128, ((x_budget_bytes // per_col) // 128) * 128)
        while td > 128 and D % td:
            td -= 128                            # td must evenly divide D
        if D % td:
            td = D  # TODO(synk): mask partial reduction blocks when D % 128 != 0 at huge S*D.
        # TODO(synk): if S itself is huge, also tile S with an online-softmax epilogue.
        return tb, min(td, D)

    # Full-D blocks; largest batch block under budget.
    tb = min(B, x_budget_bytes // row_bytes)
    if B >= 16:
        # v7x: keep >=2 batch-grid steps so the "parallel" axis shards across
        # both TensorCores (harmless no-op on single-TC v5e/v6e).
        tb = min(tb, -(-B // 2))
    if tb < B:
        tb = max(8, (tb // 8) * 8)               # (tb, S) blocks need 8-aligned sublanes
    return min(tb, B), D


def linear_seq_att(x, x_mask, w, b=None):
    """x: (B,S,D), x_mask: (B,S) bool, w: (D,1), b ignored -> (B,S) f32 attention.

    `b` is accepted for API parity with nn.Linear(input_size, 1) but never
    enters the kernel: adding a constant to every score in a row cannot change
    the softmax output.
    """
    del b
    B, S, D = x.shape
    x_itemsize = jnp.dtype(x.dtype).itemsize
    tb, td = _choose_blocks(B, S, D, x_itemsize)

    mask_i32 = x_mask.astype(jnp.int32)
    w3 = w.astype(jnp.float32).reshape(1, 1, D)

    # Explicit VMEM budget: double-buffered x/mask/out/w blocks + scratch + slack.
    vmem_limit = int(
        2 * tb * S * td * x_itemsize      # x double buffer
        + 2 * tb * S * 4                  # mask double buffer (int32)
        + 2 * tb * S * 4                  # out double buffer (f32)
        + 2 * td * 4                      # w double buffer
        + tb * S * 4                      # accumulator scratch
        + (4 << 20)                       # headroom for compiler-internal scratch
    )

    # TODO(synk): for small D (<=32) with S < 128, a lane-dense output slab
    # (flatten B*S into a 128-multiple last dim + wrapper reshape) would avoid
    # masked vst.msk stores; output bytes are 1/D of input bytes so it is
    # second-order here.
    return pl.pallas_call(
        _linear_seq_att_kernel,
        out_shape=jax.ShapeDtypeStruct((B, S), jnp.float32),
        grid_spec=pltpu.PrefetchScalarGridSpec(
            num_scalar_prefetch=0,
            grid=(pl.cdiv(B, tb), pl.cdiv(D, td)),   # reduction (D) axis last
            in_specs=[
                pl.BlockSpec((tb, S, td), lambda i, k: (i, 0, k)),
                pl.BlockSpec((tb, S), lambda i, k: (i, 0)),
                pl.BlockSpec((1, 1, td), lambda i, k: (0, 0, k)),
            ],
            out_specs=pl.BlockSpec((tb, S), lambda i, k: (i, 0)),
            scratch_shapes=[pltpu.VMEM((tb, S), jnp.float32)],
        ),
        compiler_params=pltpu.CompilerParams(
            dimension_semantics=("parallel", "arbitrary"),
            vmem_limit_bytes=vmem_limit,
        ),
    )(x, mask_i32, w3)


def reference_jax(x, x_mask, w, b):
    scores = jnp.einsum("bsd,do->bs", x.astype(jnp.float32),
                        w.astype(jnp.float32)) + b
    scores = jnp.where(x_mask, -jnp.inf, scores)
    return jax.nn.softmax(scores, axis=-1)


if __name__ == "__main__":
    key = jax.random.PRNGKey(0)
    k_x, k_w, k_b = jax.random.split(key, 3)

    B, S, D = 2, 8, 32  # batch, sen_size, input_size

    x = jax.random.normal(k_x, (B, S, D), dtype=jnp.float32)

    # deterministic parameters for nn.Linear(input_size, 1)
    bound = 1.0 / jnp.sqrt(D)
    w = jax.random.uniform(k_w, (D, 1), minval=-bound, maxval=bound,
                           dtype=jnp.float32)
    b = jax.random.uniform(k_b, (), minval=-bound, maxval=bound,
                           dtype=jnp.float32)

    # deterministic mask: mask out the last two positions of every sequence
    x_mask = jnp.zeros((B, S), dtype=jnp.bool_).at[:, -2:].set(True)

    att = linear_seq_att(x, x_mask, w, b)
    att = jax.block_until_ready(att)

    ref = reference_jax(x, x_mask, w, b)
    assert att.shape == (B, S)
    assert jnp.allclose(att, ref, atol=1e-5, rtol=1e-5), (att, ref)
    assert jnp.allclose(jnp.sum(att, axis=-1), 1.0, atol=1e-5)

    print("KERNEL_OK")
</pallas_src>

<mosaic_0001>
module attributes {stable_mosaic.version = 11 : i64} {
  func.func @_linear_seq_att_kernel(%arg0: i32, %arg1: i32, %arg2: memref<2x8x32xf32, #tpu.memory_space<vmem>>, %arg3: memref<2x8xi32, #tpu.memory_space<vmem>>, %arg4: memref<1x1x32xf32, #tpu.memory_space<vmem>>, %arg5: memref<2x8xf32, #tpu.memory_space<vmem>>, %arg6: memref<2x8xf32, #tpu.memory_space<vmem>>) attributes {dimension_semantics = [#tpu.dimension_semantics<parallel>, #tpu.dimension_semantics<arbitrary>], iteration_bounds = array<i64: 1, 1>, scalar_prefetch = 0 : i64, scratch_operands = 1 : i64, tpu.core_type = #tpu.core_type<tc>, window_params = [{transform_indices = @transform_0, window_bounds = array<i64: 2, 8, 32>}, {transform_indices = @transform_1, window_bounds = array<i64: 2, 8>}, {transform_indices = @transform_2, window_bounds = array<i64: 1, 1, 32>}, {transform_indices = @transform_3, window_bounds = array<i64: 2, 8>}]} {
    %c0_i32 = arith.constant 0 : i32
    %0 = arith.cmpi eq, %arg1, %c0_i32 : i32
    %1 = arith.extui %0 : i1 to i32
    %c0_i32_0 = arith.constant 0 : i32
    %2 = arith.cmpi ne, %1, %c0_i32_0 : i32
    scf.if %2 {
      %cst_12 = arith.constant 0.000000e+00 : f32
      %14 = vector.broadcast %cst_12 : f32 to vector<2x8xf32>
      %c0_13 = arith.constant 0 : index
      %c0_14 = arith.constant 0 : index
      %15 = vector.load %arg6[%c0_13, %c0_14] : memref<2x8xf32, #tpu.memory_space<vmem>>, vector<2x8xf32>
      tpu.vector_store %arg6[%c0_13, %c0_14], %14 {strides = array<i32>} : memref<2x8xf32, #tpu.memory_space<vmem>>, vector<2x8xf32>,
    } else {
    }
    %c0 = arith.constant 0 : index
    %c0_1 = arith.constant 0 : index
    %c0_2 = arith.constant 0 : index
    %3 = vector.load %arg2[%c0, %c0_1, %c0_2] : memref<2x8x32xf32, #tpu.memory_space<vmem>>, vector<2x8x32xf32>
    %c0_3 = arith.constant 0 : index
    %c0_4 = arith.constant 0 : index
    %c0_5 = arith.constant 0 : index
    %4 = vector.load %arg4[%c0_3, %c0_4, %c0_5] : memref<1x1x32xf32, #tpu.memory_space<vmem>>, vector<1x1x32xf32>
    %c0_6 = arith.constant 0 : index
    %c0_7 = arith.constant 0 : index
    %5 = vector.load %arg6[%c0_6, %c0_7] : memref<2x8xf32, #tpu.memory_space<vmem>>, vector<2x8xf32>
    %6 = vector.broadcast %4 : vector<1x1x32xf32> to vector<2x8x32xf32>
    %7 = arith.mulf %3, %6 : vector<2x8x32xf32>
    %cst = arith.constant dense<0.000000e+00> : vector<2x8xf32>
    %8 = vector.multi_reduction <add>, %7, %cst [2] : vector<2x8x32xf32> to vector<2x8xf32>
    %9 = arith.addf %5, %8 : vector<2x8xf32>
    %c0_8 = arith.constant 0 : index
    %c0_9 = arith.constant 0 : index
    %10 = vector.load %arg6[%c0_8, %c0_9] : memref<2x8xf32, #tpu.memory_space<vmem>>, vector<2x8xf32>
    tpu.vector_store %arg6[%c0_8, %c0_9], %9 {strides = array<i32>} : memref<2x8xf32, #tpu.memory_space<vmem>>, vector<2x8xf32>,
    %c0_i32_10 = arith.constant 0 : i32
    %11 = arith.cmpi eq, %arg1, %c0_i32_10 : i32
    %12 = arith.extui %11 : i1 to i32
    %c0_i32_11 = arith.constant 0 : i32
    %13 = arith.cmpi ne, %12, %c0_i32_11 : i32
    scf.if %13 {
      %c0_12 = arith.constant 0 : index
      %c0_13 = arith.constant 0 : index
      %14 = vector.load %arg3[%c0_12, %c0_13] : memref<2x8xi32, #tpu.memory_space<vmem>>, vector<2x8xi32>
      %c0_i32_14 = arith.constant 0 : i32
      %15 = vector.broadcast %c0_i32_14 : i32 to vector<2x8xi32>
      %16 = arith.cmpi ne, %14, %15 : vector<2x8xi32>
      %c0_15 = arith.constant 0 : index
      %c0_16 = arith.constant 0 : index
      %17 = vector.load %arg6[%c0_15, %c0_16] : memref<2x8xf32, #tpu.memory_space<vmem>>, vector<2x8xf32>
      %cst_17 = arith.constant 0xFF800000 : f32
      %18 = vector.broadcast %cst_17 : f32 to vector<2x8xf32>
      %19 = arith.select %16, %18, %17 : vector<2x8xi1>, vector<2x8xf32>
      %cst_18 = arith.constant dense<0xFF800000> : vector<2xf32>
      %20 = vector.multi_reduction <maximumf>, %19, %cst_18 [1] : vector<2x8xf32> to vector<2xf32>
      %21 = vector.shape_cast %20 : vector<2xf32> to vector<2x1xf32>
      %22 = vector.broadcast %21 : vector<2x1xf32> to vector<2x8xf32>
      %23 = arith.subf %19, %22 : vector<2x8xf32>
      %24 = math.exp %23 : vector<2x8xf32>
      %cst_19 = arith.constant dense<0.000000e+00> : vector<2xf32>
      %25 = vector.multi_reduction <add>, %24, %cst_19 [1] : vector<2x8xf32> to vector<2xf32>
      %26 = vector.shape_cast %25 : vector<2xf32> to vector<2x1xf32>
      %27 = vector.broadcast %26 : vector<2x1xf32> to vector<2x8xf32>
      %28 = arith.divf %24, %27 : vector<2x8xf32>
      %c0_20 = arith.constant 0 : index
      %c0_21 = arith.constant 0 : index
      %29 = vector.load %arg5[%c0_20, %c0_21] : memref<2x8xf32, #tpu.memory_space<vmem>>, vector<2x8xf32>
      tpu.vector_store %arg5[%c0_20, %c0_21], %28 {strides = array<i32>} : memref<2x8xf32, #tpu.memory_space<vmem>>, vector<2x8xf32>,
    } else {
    }
    return
  }
  func.func @transform_0(%arg0: i32, %arg1: i32) -> (i32, i32, i32) {
    %c0_i32 = arith.constant 0 : i32
    %c0_i32_0 = arith.constant 0 : i32
    return %arg0, %c0_i32, %arg1 : i32, i32, i32
  }
  func.func @transform_1(%arg0: i32, %arg1: i32) -> (i32, i32) {
    %c0_i32 = arith.constant 0 : i32
    %c0_i32_0 = arith.constant 0 : i32
    return %arg0, %c0_i32 : i32, i32
  }
  func.func @transform_2(%arg0: i32, %arg1: i32) -> (i32, i32, i32) {
    %c0_i32 = arith.constant 0 : i32
    %c0_i32_0 = arith.constant 0 : i32
    %c0_i32_1 = arith.constant 0 : i32
    return %c0_i32, %c0_i32_0, %arg1 : i32, i32, i32
  }
  func.func @transform_3(%arg0: i32, %arg1: i32) -> (i32, i32) {
    %c0_i32 = arith.constant 0 : i32
    %c0_i32_0 = arith.constant 0 : i32
    return %arg0, %c0_i32 : i32, i32
  }
}

</mosaic_0001>

<llo_original>
// kernel: tpu_custom_call.1
$region0: #{tpu_custom_call.1}
  #allocation0 [shape = 'u32[]', space=smem, size = 0x4, offset = 0x4, fixed_abs, tag = 'smem constant byte address 0x4 - core index']
  #allocation1 [shape = 'u32[144,128]{1,0:T(1,128)}', space=vmem, size = 0x12000, scoped, tag = 'internal scratch']
  #allocation2 [shape = 'f32[2,8]{1,0:T(2,128)}', space=vmem, size = 0x400, scoped, tag = 'scratch operand']
  %s0 = inlined_call_operand.hbm [shape: f32[2,8,32], index: 0, kind: input, shape index: {}]
  %s1 = inlined_call_operand.hbm [shape: s32[2,8], index: 1, kind: input, shape index: {}]
  %s2 = inlined_call_operand.vmem [shape: f32[1,1,32], index: 2, kind: input, shape index: {}]
  %s3 = inlined_call_operand.hbm [shape: f32[2,8], index: 3, kind: output, shape index: {}]
  %s4 = sld [smem:[#allocation0]]
  $region38: #{tpu_custom_call.1} parent=0
    _
  %s6 = ssub.s32 1, %s4
  %s7 = scalar_select 0, %s6, %s4
  $region1: #{tpu_custom_call.1} parent=0
    #allocation3 [shape = 'u8[8192]{0}', space=vmem, size = 0x2000, scoped, tag = 'input window, operand 0, single buffered']
    #allocation4 [shape = 's32[1]{0}', space=sflag, size = 0x4, scoped, tag = 'scoped memory for tpu_custom_call.1']
    #allocation5 [shape = 's32[1]{0}', space=sflag, size = 0x4, scoped, tag = 'scoped memory for tpu_custom_call.1']
    #allocation6 [shape = 'u8[1024]{0}', space=vmem, size = 0x400, scoped, tag = 'input window, operand 1, single buffered']
    #allocation7 [shape = 's32[1]{0}', space=sflag, size = 0x4, scoped, tag = 'scoped memory for tpu_custom_call.1']
    #allocation8 [shape = 'u8[1024]{0}', space=vmem, size = 0x400, scoped, tag = 'output window, operand 0, single buffered']
    %8 = vsyncpa [#allocation4], 0
    %9 = vsyncpa [#allocation7], 0
    %10 = vsyncpa [#allocation5], 0
    // Predicated region
    $region2: #{tpu_custom_call.1} parent=1 // pred_check
      _
    $region3: #{tpu_custom_call.1} parent=1 // pred_check_branch
      %12 = sbr.rel (0) target = $region5
    $region4: #{tpu_custom_call.1} parent=1 // pred_region
      %s14 = ssub.s32 256, 256
      %15 = vsyncadd [#allocation4], %s14
      %s16 = sshll.u32 [#allocation3], 4
      %s17 = int_to_ptr.vmem [resolvable:$true] %s16
      %22 = dma.hbm_to_vmem [thread:$0]  %s0, 256, %s17, [#allocation4], 128, 128, 8
    $region5: #{tpu_custom_call.1} parent=1 // pred_fallthru
      _
    // Predicated region
    $region6: #{tpu_custom_call.1} parent=1 // pred_check
      _
    $region7: #{tpu_custom_call.1} parent=1 // pred_check_branch
      %24 = sbr.rel (0) target = $region9
    $region8: #{tpu_custom_call.1} parent=1 // pred_region
      %s26 = ssub.s32 32, 32
      %27 = vsyncadd [#allocation7], %s26
      %s29 = sshll.u32 [#allocation6], 4
      %s30 = int_to_ptr.vmem [resolvable:$true] %s29
      %32 = dma.hbm_to_vmem [thread:$0]  %s1, 32, %s30, [#allocation7]
    $region9: #{tpu_custom_call.1} parent=1 // pred_fallthru
      _
    // Predicated region
    $region10: #{tpu_custom_call.1} parent=1 // pred_check
      _
    $region11: #{tpu_custom_call.1} parent=1 // pred_check_branch
      %34 = sbr.rel (0) target = $region13
    $region12: #{tpu_custom_call.1} parent=1 // pred_region
      _
    $region13: #{tpu_custom_call.1} parent=1 // pred_fallthru
      _
    // Predicated region
    $region14: #{tpu_custom_call.1} parent=1 // pred_check
      _
    $region15: #{tpu_custom_call.1} parent=1 // pred_check_branch
      %36 = sbr.rel (0) target = $region17
    $region16: #{tpu_custom_call.1} parent=1 // pred_region
      %37 = dma.done [#allocation4], 256
    $region17: #{tpu_custom_call.1} parent=1 // pred_fallthru
      _
    // Predicated region
    $region18: #{tpu_custom_call.1} parent=1 // pred_check
      _
    $region19: #{tpu_custom_call.1} parent=1 // pred_check_branch
      %39 = sbr.rel (0) target = $region21
    $region20: #{tpu_custom_call.1} parent=1 // pred_region
      %40 = dma.done [#allocation7], 32
    $region21: #{tpu_custom_call.1} parent=1 // pred_fallthru
      _
    %p41 = scmp.eq.s32.totalorder 0, 0
    // Predicated region
    $region22: #{tpu_custom_call.1} parent=1 // pred_check
      %p42 = pneg %p41
    $region23: #{tpu_custom_call.1} parent=1 // pred_check_branch
      %44 = sbr.rel (%p42) target = $region25
    $region24: #{tpu_custom_call.1} parent=1 // pred_region
      %vm45 = vcmask 58368
      %46 = vst.msk [vmem:[#allocation2] sm:$0x3] %vm45, 0.0
    $region25: #{tpu_custom_call.1} parent=1 // pred_fallthru
      _
    %v47 = vld [vmem:[#allocation3] sm:$0xff]
    %v48 = vld [vmem:[#allocation3 + $0x8] sm:$0xff]
    %v49 = vld [vmem:[%s2] sm:$0x1]
    %v50 = vld [vmem:[#allocation2] sm:$0x3]
    %v52 = vlaneseq
    %v53 = vshrl.u32 %v52, 7
    %v54 = vsub.s32 0, %v53
    %v55 = vrot.slane %v49, %v54
    %v57 = vmul.f32 %v47, %v55
    %v58 = vmul.f32 %v48, %v55
    %vm59 = vcmask 261120
    %v60 = vsel %vm59, %v57, 0.0
    %61 = vadd.xlane.f32.xlu0 %v60
    %v62 = vpop.xlane.xlu0 %61
    %v63 = vsel %vm59, %v58, 0.0
    %64 = vadd.xlane.f32.xlu0 %v63
    %v65 = vpop.xlane.xlu0 %64
    %v68 = vlaneseq
    %v69 = vand.u32 %v68, 127
    %v70 = vlaneseq
    %v71 = vshrl.u32 %v70, 7
    %v72 = vsub.s32 %v69, %v71
    %v73 = vrot.slane %v62, %v72
    %v74 = vlaneseq
    %v75 = vshrl.u32 %v74, 7
    %v76 = vsub.s32 %v69, %v75
    %v77 = vrot.slane %v65, %v76
    %vm78 = vcmask 1041409
    %v79 = vsel %vm78, %v77, %v73
    %v81 = vadd.f32 %v50, %v79
    %vm82 = vcmask 58368
    %83 = vst.msk [vmem:[#allocation2] sm:$0x3] %vm82, %v81
    // Predicated region
    $region26: #{tpu_custom_call.1} parent=1 // pred_check
      %p84 = pneg %p41
    $region27: #{tpu_custom_call.1} parent=1 // pred_check_branch
      %86 = sbr.rel (%p84) target = $region29
    $region28: #{tpu_custom_call.1} parent=1 // pred_region
      %v87 = vld [vmem:[#allocation6] sm:$0x3]
      %vm88 = vcmp.ne.s32.totalorder %v87, 0
      %v89 = vld [vmem:[#allocation2] sm:$0x3]
      %v90 = vsel %vm88, -inf, %v89
      %v91 = vsel %vm82, %v90, -inf
      %92 = vmax.xlane.f32.xlu0 %v91
      %v93 = vpop.xlane.xlu0 %92
      %v94 = vsub.f32 %v90, %v93
      %v95 = vmul.f32 %v94, 1.442695
      %v96 = vpow.pop %v95
      %v97 = vsel %vm82, %v96, 0.0
      %98 = vadd.xlane.f32.xlu0 %v97
      %v99 = vpop.xlane.xlu0 %98
      %v100 = vrcp.pop %v99
      %v101 = vmul.f32 %v96, %v100
      %102 = vst.msk [vmem:[#allocation8] sm:$0x3] %vm82, %v101
    $region29: #{tpu_custom_call.1} parent=1 // pred_fallthru
      _
    // Predicated region
    $region30: #{tpu_custom_call.1} parent=1 // pred_check
      _
    $region31: #{tpu_custom_call.1} parent=1 // pred_check_branch
      %104 = sbr.rel (0) target = $region33
    $region32: #{tpu_custom_call.1} parent=1 // pred_region
      %s106 = ssub.s32 32, 32
      %107 = vsyncadd [#allocation5], %s106
      %s109 = sshll.u32 [#allocation8], 4
      %s110 = int_to_ptr.vmem [resolvable:$true] %s109
      %112 = dma.vmem_to_hbm [thread:$0]  %s110, 32, %s3, [#allocation5]
    $region33: #{tpu_custom_call.1} parent=1 // pred_fallthru
      _
    // Predicated region
    $region34: #{tpu_custom_call.1} parent=1 // pred_check
      _
    $region35: #{tpu_custom_call.1} parent=1 // pred_check_branch
      %114 = sbr.rel (0) target = $region37
    $region36: #{tpu_custom_call.1} parent=1 // pred_region
      %115 = dma.done [#allocation5], 32
    $region37: #{tpu_custom_call.1} parent=1 // pred_fallthru
      _
    %116 = vsyncpa [#allocation4], 1
    %117 = vsyncpa [#allocation7], 1
    %118 = vsyncpa [#allocation5], 1

</llo_original>
